<compile_context>
chip_gen: v7x
topology: tpu7x:2x2x1
jax: 0.10.0
libtpu: 0.0.40
codegen_flags: <defaults>
</compile_context>

<pallas_src>
import functools

import jax
import jax.numpy as jnp
from jax.experimental import pallas as pl
from jax.experimental.pallas import tpu as pltpu


def _round_up(x, m):
    return (x + m - 1) // m * m


def _pad_axis(x, axis, new_size):
    if x.shape[axis] == new_size:
        return x
    pad = [(0, 0)] * x.ndim
    pad[axis] = (0, new_size - x.shape[axis])
    return jnp.pad(x, pad)


def _pad_gate_dim(w, H, Hp):
    """Pad the trailing 4H gate axis (PyTorch i,f,g,o blocks) to 4*Hp, per gate."""
    if Hp == H:
        return w
    lead = w.shape[:-1]
    w4 = w.reshape(lead + (4, H))
    w4 = _pad_axis(w4, w4.ndim - 1, Hp)
    return w4.reshape(lead + (4 * Hp,))


# ------------- tiled matmul-with-bias kernel (hoisted, non-recurrent projections) -------------
def _matmul_bias_kernel(x_ref, w_ref, b_ref, o_ref):
    o_ref[...] = (
        jnp.dot(x_ref[...], w_ref[...], preferred_element_type=jnp.float32)
        + b_ref[...]
    ).astype(o_ref.dtype)


def matmul_bias(x, w, b, *, out_dtype=jnp.float32, tm=128, tn=256):
    """(M, K) @ (K, N) + (N,) -> (M, N).  Full-K blocks; M and N tiled and padded."""
    M, K = x.shape
    _, N = w.shape
    tm = min(tm, _round_up(M, 8))
    tn = min(tn, _round_up(N, 128))
    Mp, Np = _round_up(M, tm), _round_up(N, tn)
    xp = _pad_axis(x, 0, Mp)
    wp = _pad_axis(w, 1, Np)
    bp = _pad_axis(b.reshape(1, N), 1, Np)

    out = pl.pallas_call(
        _matmul_bias_kernel,
        out_shape=jax.ShapeDtypeStruct((Mp, Np), out_dtype),
        grid_spec=pltpu.PrefetchScalarGridSpec(
            num_scalar_prefetch=0,
            grid=(Mp // tm, Np // tn),
            in_specs=[
                pl.BlockSpec((tm, K), lambda i, j: (i, 0)),
                pl.BlockSpec((K, tn), lambda i, j: (0, j)),
                pl.BlockSpec((1, tn), lambda i, j: (0, j)),
            ],
            out_specs=pl.BlockSpec((tm, tn), lambda i, j: (i, j)),
        ),
        compiler_params=pltpu.CompilerParams(
            dimension_semantics=("parallel", "parallel"),
            vmem_limit_bytes=64 * 1024 * 1024,
        ),
    )(xp, wp, bp)
    return out[:M, :N]


# ---------------------------- serial 2-layer LSTM recurrence ----------------------------
def _lstm_recurrent_kernel(
    gx0_ref,    # (bb, Tc, 4Hp) bf16: precomputed x @ Wih0 + b0 for this chunk
    whh0_ref,   # (Hp, 4Hp)  bf16
    wih1_ref,   # (Hp, 4Hp)  bf16
    whh1_ref,   # (Hp, 4Hp)  bf16
    b1_ref,     # (1, 4Hp)   f32
    h2out_ref,  # (bb, Tc, Hp) f32, batch-first
    h1, c1, h2, c2,   # VMEM scratch (bb, Hp) f32, carried across time chunks
    *, hidden_pad, chunk,
):
    Hp = hidden_pad
    bf16 = jnp.bfloat16

    # State init at the first time chunk of each batch block.
    @pl.when(pl.program_id(1) == 0)
    def _():
        h1[...] = jnp.zeros_like(h1)
        c1[...] = jnp.zeros_like(c1)
        h2[...] = jnp.zeros_like(h2)
        c2[...] = jnp.zeros_like(c2)

    def sigmoid(x):
        # sigmoid(x) = 0.5*tanh(0.5*x) + 0.5 : one EUP op instead of exp + reciprocal.
        return 0.5 * jnp.tanh(0.5 * x) + 0.5

    def gate_update(gates, c_prev):
        # PyTorch gate order i, f, g, o; Hp is a multiple of 128 -> lane-aligned slices.
        i_g = sigmoid(gates[:, 0 * Hp:1 * Hp])
        f_g = sigmoid(gates[:, 1 * Hp:2 * Hp])
        g_g = jnp.tanh(gates[:, 2 * Hp:3 * Hp])
        o_g = sigmoid(gates[:, 3 * Hp:4 * Hp])
        c_new = f_g * c_prev + i_g * g_g
        h_new = o_g * jnp.tanh(c_new)
        return h_new, c_new

    # Static Python unroll over the time chunk: every ref slice is static, and the
    # weight operands are read from their refs at each matmul call site (no SSA
    # hoisting -> MXU streams them from VMEM, no vreg spills in the unrolled body).
    for t in range(chunk):
        # Layer-1 h-recurrence depends only on t-1 state: issue it first so it
        # overlaps with layer-0's matmul + EUP chain (off the critical path).
        gates1 = jnp.dot(h2[...].astype(bf16), whh1_ref[...],
                         preferred_element_type=jnp.float32) + b1_ref[...]

        # Layer 0: input projection was hoisted out of the kernel; only h1 @ Whh0
        # remains on the serial critical path.
        gates0 = gx0_ref[:, t, :].astype(jnp.float32) + jnp.dot(
            h1[...].astype(bf16), whh0_ref[...], preferred_element_type=jnp.float32)
        h1_new, c1_new = gate_update(gates0, c1[...])
        h1[...] = h1_new
        c1[...] = c1_new

        # Layer 1: add the input half once h1_new is available (no lane concat).
        gates1 = gates1 + jnp.dot(h1_new.astype(bf16), wih1_ref[...],
                                  preferred_element_type=jnp.float32)
        h2_new, c2_new = gate_update(gates1, c2[...])
        h2[...] = h2_new
        c2[...] = c2_new

        # Batch-first, lane-dense (Hp multiple of 128) store.
        h2out_ref[:, t, :] = h2_new.astype(h2out_ref.dtype)


def _run_recurrence(gx0, whh0, wih1, whh1, b1, *, Bp, Tp, Hp, bb, Tc):
    nb, nt = Bp // bb, Tp // Tc
    kernel = functools.partial(_lstm_recurrent_kernel, hidden_pad=Hp, chunk=Tc)

    def build(single_buffer_consts):
        def const_spec(a):
            zero_map = lambda b, s, _n=a.ndim: (0,) * _n
            if single_buffer_consts:
                # Constant blocks never change across grid steps; single-buffering
                # halves their VMEM footprint (matters at real H on v7x's 64 MiB VMEM).
                return pl.BlockSpec(a.shape, zero_map, pipeline_mode=pl.Buffered(1))
            return pl.BlockSpec(a.shape, zero_map)

        return pl.pallas_call(
            kernel,
            out_shape=jax.ShapeDtypeStruct((Bp, Tp, Hp), jnp.float32),
            grid_spec=pltpu.PrefetchScalarGridSpec(
                num_scalar_prefetch=0,
                grid=(nb, nt),
                in_specs=[
                    pl.BlockSpec((bb, Tc, 4 * Hp), lambda b, s: (b, s, 0)),
                    const_spec(whh0), const_spec(wih1), const_spec(whh1), const_spec(b1),
                ],
                out_specs=pl.BlockSpec((bb, Tc, Hp), lambda b, s: (b, s, 0)),
                scratch_shapes=[pltpu.VMEM((bb, Hp), jnp.float32)] * 4,  # h1, c1, h2, c2
            ),
            compiler_params=pltpu.CompilerParams(
                # batch blocks are independent (v7x dual-TC); time is strictly serial
                dimension_semantics=("parallel", "arbitrary"),
                vmem_limit_bytes=64 * 1024 * 1024,
            ),
        )

    try:
        return build(True)(gx0, whh0, wih1, whh1, b1)
    except Exception:
        # Fallback for JAX/Mosaic versions without single-buffer pipeline_mode support.
        return build(False)(gx0, whh0, wih1, whh1, b1)


def decoder_rnn_forward(features, captions, params, *, chunk=32, batch_block=None):
    """features: (B, E) f32, captions: (B, L) int32. Returns (B, L, V) f32 logits."""
    embed_w = params["embed"]          # (V, E)
    B, E = features.shape
    H = params["whh0"].shape[1]        # weight_hh_l0: (4H, H)
    V = embed_w.shape[0]

    Bp = _round_up(B, 8)               # sublane padding
    Hp = _round_up(H, 128)             # lane padding (gate slices / h2 stores)
    if batch_block is None:
        bb = Bp                        # single batch block at small B
    else:
        bb = _round_up(min(batch_block, Bp), 8)
        Bp = _round_up(Bp, bb)

    # --- glue: embedding gather + feature/token concat (batch-first, plain JAX) ---
    emb = jnp.take(embed_w, captions[:, :-1], axis=0)           # (B, L-1, E)
    emb = jnp.concatenate([features[:, None, :], emb], axis=1)  # (B, T, E), T = L
    T = emb.shape[1]
    Tc = min(chunk, T)                 # short captions: one time chunk, gx0 fully resident
    Tp = _round_up(T, Tc)
    emb_p = _pad_axis(_pad_axis(emb, 0, Bp), 1, Tp)             # (Bp, Tp, E)

    bf16 = jnp.bfloat16
    # --- weight prep: transpose to x @ W^T form, per-gate padding of the 4H axis ---
    wih0 = _pad_gate_dim(params["wih0"].T, H, Hp).astype(bf16)                        # (E, 4Hp)
    b0 = _pad_gate_dim(params["bih0"] + params["bhh0"], H, Hp)                        # (4Hp,)
    whh0 = _pad_gate_dim(_pad_axis(params["whh0"].T, 0, Hp), H, Hp).astype(bf16)      # (Hp, 4Hp)
    wih1 = _pad_gate_dim(_pad_axis(params["wih1"].T, 0, Hp), H, Hp).astype(bf16)      # (Hp, 4Hp)
    whh1 = _pad_gate_dim(_pad_axis(params["whh1"].T, 0, Hp), H, Hp).astype(bf16)      # (Hp, 4Hp)
    b1 = _pad_gate_dim(params["bih1"] + params["bhh1"], H, Hp).reshape(1, 4 * Hp)     # (1, 4Hp)
    wlin = _pad_axis(params["wlin"].T, 0, Hp).astype(bf16)                            # (Hp, V)
    blin = params["blin"]                                                             # (V,)

    # --- hoisted layer-0 input projection: one big (B*T)-row MXU matmul, bf16 out ---
    gx0 = matmul_bias(emb_p.reshape(Bp * Tp, E).astype(bf16), wih0, b0,
                      out_dtype=bf16, tn=512)                   # (Bp*Tp, 4Hp) bf16
    gx0 = gx0.reshape(Bp, Tp, 4 * Hp)

    # --- serial recurrence: emits h2 batch-first, only h-dependent matmuls inside ---
    h2_seq = _run_recurrence(gx0, whh0, wih1, whh1, b1,
                             Bp=Bp, Tp=Tp, Hp=Hp, bb=bb, Tc=Tc)  # (Bp, Tp, Hp) f32

    # --- vocab projection over all (B*T) rows; already batch-first, no transpose.
    # tm covers all rows so wlin is streamed from HBM exactly once; tn=512 amortizes
    # per-grid-step overhead with large lane-dense stores.
    h2_rows = h2_seq[:B, :T].reshape(B * T, Hp).astype(bf16)
    logits = matmul_bias(h2_rows, wlin, blin,
                         tm=_round_up(B * T, 8), tn=512)         # (B*T, V) f32
    return logits.reshape(B, T, V)


# ---------------- pure-JAX reference (f32, for correctness check) ----------------
def decoder_rnn_reference(features, captions, params):
    embed_w = params["embed"]
    H = params["whh0"].shape[1]
    emb = jnp.take(embed_w, captions[:, :-1], axis=0)
    emb = jnp.concatenate([features[:, None, :], emb], axis=1)  # (B, T, E)
    B = emb.shape[0]

    def cell(x, h, c, wih, whh, bih, bhh):
        g = x @ wih.T + bih + h @ whh.T + bhh
        i, f, gg, o = jnp.split(g, 4, axis=-1)
        c = jax.nn.sigmoid(f) * c + jax.nn.sigmoid(i) * jnp.tanh(gg)
        h = jax.nn.sigmoid(o) * jnp.tanh(c)
        return h, c

    def step(carry, x_t):
        h1, c1, h2, c2 = carry
        h1, c1 = cell(x_t, h1, c1, params["wih0"], params["whh0"], params["bih0"], params["bhh0"])
        h2, c2 = cell(h1, h2, c2, params["wih1"], params["whh1"], params["bih1"], params["bhh1"])
        return (h1, c1, h2, c2), h2

    z = jnp.zeros((B, H), jnp.float32)
    _, hs = jax.lax.scan(step, (z, z, z, z), jnp.transpose(emb, (1, 0, 2)))
    out = jnp.einsum("tbh,vh->tbv", hs, params["wlin"]) + params["blin"]
    return jnp.transpose(out, (1, 0, 2))


if __name__ == "__main__":
    # small shapes: batch=2, embed=32, hidden=32, vocab=64, caption length=8
    B, E, H, V, L = 2, 32, 32, 64, 8

    key = jax.random.PRNGKey(0)
    keys = jax.random.split(key, 16)
    s = 0.1

    params = {
        "embed": jax.random.normal(keys[0], (V, E), jnp.float32) * s,
        "wih0": jax.random.normal(keys[1], (4 * H, E), jnp.float32) * s,
        "whh0": jax.random.normal(keys[2], (4 * H, H), jnp.float32) * s,
        "bih0": jax.random.normal(keys[3], (4 * H,), jnp.float32) * s,
        "bhh0": jax.random.normal(keys[4], (4 * H,), jnp.float32) * s,
        "wih1": jax.random.normal(keys[5], (4 * H, H), jnp.float32) * s,
        "whh1": jax.random.normal(keys[6], (4 * H, H), jnp.float32) * s,
        "bih1": jax.random.normal(keys[7], (4 * H,), jnp.float32) * s,
        "bhh1": jax.random.normal(keys[8], (4 * H,), jnp.float32) * s,
        "wlin": jax.random.normal(keys[9], (V, H), jnp.float32) * s,
        "blin": jax.random.normal(keys[10], (V,), jnp.float32) * s,
    }

    features = jax.random.normal(keys[11], (B, E), jnp.float32)
    captions = jax.random.randint(keys[12], (B, L), 0, V, jnp.int32)

    out = decoder_rnn_forward(features, captions, params)
    out = jax.block_until_ready(out)

    ref = decoder_rnn_reference(features, captions, params)
    assert out.shape == (B, L, V), out.shape
    max_err = float(jnp.max(jnp.abs(out - ref)))
    # bf16 matmul operands + bf16 gx0 pre-activations (f32 accumulation / state) ->
    # small but nonzero deviation vs the f32 reference.
    assert jnp.allclose(out, ref, atol=3e-2, rtol=3e-2), max_err

    print("KERNEL_OK")
</pallas_src>

<mosaic_0001>
module attributes {stable_mosaic.version = 11 : i64} {
  func.func @_matmul_bias_kernel(%arg0: i32, %arg1: i32, %arg2: memref<64x32xbf16, #tpu.memory_space<vmem>>, %arg3: memref<32x512xbf16, #tpu.memory_space<vmem>>, %arg4: memref<1x512xf32, #tpu.memory_space<vmem>>, %arg5: memref<64x512xbf16, #tpu.memory_space<vmem>>) attributes {dimension_semantics = [#tpu.dimension_semantics<parallel>, #tpu.dimension_semantics<parallel>], iteration_bounds = array<i64: 1, 1>, scalar_prefetch = 0 : i64, scratch_operands = 0 : i64, tpu.core_type = #tpu.core_type<tc>, window_params = [{transform_indices = @transform_0, window_bounds = array<i64: 64, 32>}, {transform_indices = @transform_1, window_bounds = array<i64: 32, 512>}, {transform_indices = @transform_2, window_bounds = array<i64: 1, 512>}, {transform_indices = @transform_3, window_bounds = array<i64: 64, 512>}]} {
    %c0 = arith.constant 0 : index
    %c0_0 = arith.constant 0 : index
    %0 = vector.load %arg2[%c0, %c0_0] : memref<64x32xbf16, #tpu.memory_space<vmem>>, vector<64x32xbf16>
    %c0_1 = arith.constant 0 : index
    %c0_2 = arith.constant 0 : index
    %1 = vector.load %arg3[%c0_1, %c0_2] : memref<32x512xbf16, #tpu.memory_space<vmem>>, vector<32x512xbf16>
    %cst = arith.constant dense<0.000000e+00> : vector<64x512xf32>
    %2 = tpu.matmul %0, %1, %cst {dimension_numbers = #tpu.dot_dimension_numbers<[1], [0], [0], [1], [0, 0, 1, 1], [], []>} : vector<64x32xbf16>, vector<32x512xbf16>, vector<64x512xf32> -> vector<64x512xf32>
    %c0_3 = arith.constant 0 : index
    %c0_4 = arith.constant 0 : index
    %3 = vector.load %arg4[%c0_3, %c0_4] : memref<1x512xf32, #tpu.memory_space<vmem>>, vector<1x512xf32>
    %4 = vector.broadcast %3 : vector<1x512xf32> to vector<64x512xf32>
    %5 = arith.addf %2, %4 : vector<64x512xf32>
    %6 = arith.truncf %5 : vector<64x512xf32> to vector<64x512xbf16>
    %c0_5 = arith.constant 0 : index
    %c0_6 = arith.constant 0 : index
    %7 = vector.load %arg5[%c0_5, %c0_6] : memref<64x512xbf16, #tpu.memory_space<vmem>>, vector<64x512xbf16>
    tpu.vector_store %arg5[%c0_5, %c0_6], %6 {strides = array<i32>} : memref<64x512xbf16, #tpu.memory_space<vmem>>, vector<64x512xbf16>,
    return
  }
  func.func @transform_0(%arg0: i32, %arg1: i32) -> (i32, i32) {
    %c0_i32 = arith.constant 0 : i32
    %c0_i32_0 = arith.constant 0 : i32
    return %arg0, %c0_i32 : i32, i32
  }
  func.func @transform_1(%arg0: i32, %arg1: i32) -> (i32, i32) {
    %c0_i32 = arith.constant 0 : i32
    %c0_i32_0 = arith.constant 0 : i32
    return %c0_i32, %arg1 : i32, i32
  }
  func.func @transform_2(%arg0: i32, %arg1: i32) -> (i32, i32) {
    %c0_i32 = arith.constant 0 : i32
    %c0_i32_0 = arith.constant 0 : i32
    return %c0_i32, %arg1 : i32, i32
  }
  func.func @transform_3(%arg0: i32, %arg1: i32) -> (i32, i32) {
    %c0_i32 = arith.constant 0 : i32
    return %arg0, %arg1 : i32, i32
  }
}

</mosaic_0001>

<llo_original>
// kernel: tpu_custom_call.1
$region0: #{tpu_custom_call.1}
  #allocation0 [shape = 'u32[]', space=smem, size = 0x4, offset = 0x4, fixed_abs, tag = 'smem constant byte address 0x4 - core index']
  #allocation1 [shape = 'u32[144,128]{1,0:T(1,128)}', space=vmem, size = 0x12000, scoped, tag = 'internal scratch']
  %s0 = inlined_call_operand.hbm [shape: bf16[64,32], index: 0, kind: input, shape index: {}]
  %s1 = inlined_call_operand.hbm [shape: bf16[32,512], index: 1, kind: input, shape index: {}]
  %s2 = inlined_call_operand.hbm [shape: f32[1,512], index: 2, kind: input, shape index: {}]
  %s3 = inlined_call_operand.hbm [shape: bf16[64,512], index: 3, kind: output, shape index: {}]
  %s4 = sld [smem:[#allocation0]]
  $region34: #{tpu_custom_call.1} parent=0
    _
  %s6 = ssub.s32 1, %s4
  %s7 = scalar_select 0, %s6, %s4
  $region1: #{tpu_custom_call.1} parent=0
    #allocation2 [shape = 'u8[16384]{0}', space=vmem, size = 0x4000, scoped, tag = 'input window, operand 0, single buffered']
    #allocation3 [shape = 's32[1]{0}', space=sflag, size = 0x4, scoped, tag = 'scoped memory for tpu_custom_call.1']
    #allocation4 [shape = 's32[1]{0}', space=sflag, size = 0x4, scoped, tag = 'scoped memory for tpu_custom_call.1']
    #allocation5 [shape = 'u8[32768]{0}', space=vmem, size = 0x8000, scoped, tag = 'input window, operand 1, single buffered']
    #allocation6 [shape = 's32[1]{0}', space=sflag, size = 0x4, scoped, tag = 'scoped memory for tpu_custom_call.1']
    #allocation7 [shape = 'u8[2048]{0}', space=vmem, size = 0x800, scoped, tag = 'input window, operand 2, single buffered']
    #allocation8 [shape = 'u8[65536]{0}', space=vmem, size = 0x10000, scoped, tag = 'output window, operand 0, single buffered']
    %8 = vsyncpa [#allocation3], 0
    %9 = vsyncpa [#allocation6], 0
    %10 = vsyncpa [#allocation4], 0
    // Predicated region
    $region2: #{tpu_custom_call.1} parent=1 // pred_check
      _
    $region3: #{tpu_custom_call.1} parent=1 // pred_check_branch
      %12 = sbr.rel (0) target = $region5
    $region4: #{tpu_custom_call.1} parent=1 // pred_region
      %s14 = ssub.s32 512, 512
      %15 = vsyncadd [#allocation3], %s14
      %s16 = sshll.u32 [#allocation2], 4
      %s17 = int_to_ptr.vmem [resolvable:$true] %s16
      %22 = dma.hbm_to_vmem [thread:$0]  %s0, 512, %s17, [#allocation3], 64, 64, 4
    $region5: #{tpu_custom_call.1} parent=1 // pred_fallthru
      _
    // Predicated region
    $region6: #{tpu_custom_call.1} parent=1 // pred_check
      _
    $region7: #{tpu_custom_call.1} parent=1 // pred_check_branch
      %24 = sbr.rel (0) target = $region9
    $region8: #{tpu_custom_call.1} parent=1 // pred_region
      %s26 = ssub.s32 1024, 1024
      %27 = vsyncadd [#allocation6], %s26
      %s28 = sshll.u32 [#allocation5], 4
      %s29 = int_to_ptr.vmem [resolvable:$true] %s28
      %34 = dma.hbm_to_vmem [thread:$0]  %s1, 1024, %s29, [#allocation6], 256, 256, 16
    $region9: #{tpu_custom_call.1} parent=1 // pred_fallthru
      _
    // Predicated region
    $region10: #{tpu_custom_call.1} parent=1 // pred_check
      _
    $region11: #{tpu_custom_call.1} parent=1 // pred_check_branch
      %36 = sbr.rel (0) target = $region13
    $region12: #{tpu_custom_call.1} parent=1 // pred_region
      %s38 = ssub.s32 64, 64
      %39 = vsyncadd [#allocation6], %s38
      %s41 = sshll.u32 [#allocation7], 4
      %s42 = int_to_ptr.vmem [resolvable:$true] %s41
      %44 = dma.hbm_to_vmem [thread:$0]  %s2, 64, %s42, [#allocation6]
    $region13: #{tpu_custom_call.1} parent=1 // pred_fallthru
      _
    // Predicated region
    $region14: #{tpu_custom_call.1} parent=1 // pred_check
      _
    $region15: #{tpu_custom_call.1} parent=1 // pred_check_branch
      %46 = sbr.rel (0) target = $region17
    $region16: #{tpu_custom_call.1} parent=1 // pred_region
      %47 = dma.done [#allocation3], 512
    $region17: #{tpu_custom_call.1} parent=1 // pred_fallthru
      _
    // Predicated region
    $region18: #{tpu_custom_call.1} parent=1 // pred_check
      _
    $region19: #{tpu_custom_call.1} parent=1 // pred_check_branch
      %49 = sbr.rel (0) target = $region21
    $region20: #{tpu_custom_call.1} parent=1 // pred_region
      %50 = dma.done [#allocation6], 1024
    $region21: #{tpu_custom_call.1} parent=1 // pred_fallthru
      _
    // Predicated region
    $region22: #{tpu_custom_call.1} parent=1 // pred_check
      _
    $region23: #{tpu_custom_call.1} parent=1 // pred_check_branch
      %52 = sbr.rel (0) target = $region25
    $region24: #{tpu_custom_call.1} parent=1 // pred_region
      %53 = dma.done [#allocation6], 64
    $region25: #{tpu_custom_call.1} parent=1 // pred_fallthru
      _
    %v55 = vld [vmem:[#allocation2] sm:$0xf]
    %v56 = vld [vmem:[#allocation2 + $0x4] sm:$0xf]
    %v57 = vld [vmem:[#allocation2 + $0x8] sm:$0xf]
    %v58 = vld [vmem:[#allocation2 + $0xc] sm:$0xf]
    %v59 = vld [vmem:[#allocation2 + $0x10] sm:$0xf]
    %v60 = vld [vmem:[#allocation2 + $0x14] sm:$0xf]
    %v61 = vld [vmem:[#allocation2 + $0x18] sm:$0xf]
    %v62 = vld [vmem:[#allocation2 + $0x1c] sm:$0xf]
    %v63 = vld [vmem:[#allocation5] sm:$0xff]
    %v64 = vld [vmem:[#allocation5 + $0x8] sm:$0xff]
    %v65 = vld [vmem:[#allocation5 + $0x10] sm:$0xff]
    %v66 = vld [vmem:[#allocation5 + $0x18] sm:$0xff]
    %v67 = vld [vmem:[#allocation5 + $0x20] sm:$0xff]
    %v68 = vld [vmem:[#allocation5 + $0x28] sm:$0xff]
    %v69 = vld [vmem:[#allocation5 + $0x30] sm:$0xff]
    %v70 = vld [vmem:[#allocation5 + $0x38] sm:$0xff]
    %v71 = vld [vmem:[#allocation7] sm:$0xf]
    %v73 = vlaneseq
    %v74 = vshrl.u32 %v73, 7
    %v75 = vsub.s32 0, %v74
    %v76 = vrot.slane %v71, %v75
    %v77 = vlaneseq
    %v78 = vshrl.u32 %v77, 7
    %v79 = vsub.s32 1, %v78
    %v80 = vrot.slane %v71, %v79
    %v81 = vlaneseq
    %v82 = vshrl.u32 %v81, 7
    %v83 = vsub.s32 2, %v82
    %v84 = vrot.slane %v71, %v83
    %v85 = vlaneseq
    %v86 = vshrl.u32 %v85, 7
    %v87 = vsub.s32 3, %v86
    %v88 = vrot.slane %v71, %v87
    %v101 = vunpack.c.l.b16 %v55
    %v102 = vunpack.c.l.b16 %v56
    %v103 = vunpack.c.l.b16 %v57
    %v104 = vunpack.c.l.b16 %v58
    %v105 = vunpack.c.l.b16 %v59
    %v106 = vunpack.c.l.b16 %v60
    %v107 = vunpack.c.l.b16 %v61
    %v108 = vunpack.c.l.b16 %v62
    %v109 = vpack.c.b16 %v102, %v101
    %v110 = vpack.c.b16 %v104, %v103
    %v111 = vpack.c.b16 %v106, %v105
    %v112 = vpack.c.b16 %v108, %v107
    %v121 = vunpack.c.l.b16 %v63
    %v122 = vunpack.c.h.b16 %v63
    %v123 = vunpack.c.l.b16 %v64
    %v124 = vunpack.c.h.b16 %v64
    %v125 = vunpack.c.l.b16 %v65
    %v126 = vunpack.c.h.b16 %v65
    %v127 = vunpack.c.l.b16 %v66
    %v128 = vunpack.c.h.b16 %v66
    %v129 = vunpack.c.l.b16 %v67
    %v130 = vunpack.c.h.b16 %v67
    %v131 = vunpack.c.l.b16 %v68
    %v132 = vunpack.c.h.b16 %v68
    %v133 = vunpack.c.l.b16 %v69
    %v134 = vunpack.c.h.b16 %v69
    %v135 = vunpack.c.l.b16 %v70
    %v136 = vunpack.c.h.b16 %v70
    %v137 = vpack.c.b16 %v125, %v121
    %v138 = vpack.c.b16 %v126, %v122
    %v139 = vpack.c.b16 %v127, %v123
    %v140 = vpack.c.b16 %v128, %v124
    %v141 = vpack.c.b16 %v133, %v129
    %v142 = vpack.c.b16 %v134, %v130
    %v143 = vpack.c.b16 %v135, %v131
    %v144 = vpack.c.b16 %v136, %v132
    %vm153 = vcmask 261120
    %v155 = vsel %vm153, %v109, 0
    %v158 = vsel %vm153, %v110, 0
    %v161 = vsel %vm153, %v111, 0
    %v164 = vsel %vm153, %v112, 0
    %166 = vmatprep.subr.bf16.mxu0 %v138
    %167 = vmatpush1.bf16.msra.mxu0 %v137
    %168 = vmatprep.subr.bf16.mxu0 %v142
    %169 = vmatpush1.bf16.msra.mxu0 %v141
    %170 = vmatprep.subr.bf16.mxu0 0
    %171 = vmatpush1.bf16.msra.mxu0 0
    %172 = vmatprep.subr.bf16.mxu0 0
    %173 = vmatpush1.bf16.msra.mxu0 0
    %174 = vmatprep.subr.bf16.mxu0 0
    %175 = vmatpush1.bf16.msra.mxu0 0
    %176 = vmatprep.subr.bf16.mxu0 0
    %177 = vmatpush1.bf16.msra.mxu0 0
    %178 = vmatprep.subr.bf16.mxu0 0
    %179 = vmatpush1.bf16.msra.mxu0 0
    %180 = vmatprep.subr.bf16.mxu0 0
    %181 = vmatpush1.bf16.msra.mxu0 0
    %182 = vmatprep.subr.bf16.mxu0 0
    %183 = vmatpush1.bf16.msra.mxu0 0
    %184 = vmatprep.subr.bf16.mxu0 0
    %185 = vmatpush1.bf16.msra.mxu0 0
    %186 = vmatprep.subr.bf16.mxu0 0
    %187 = vmatpush1.bf16.msra.mxu0 0
    %188 = vmatprep.subr.bf16.mxu0 0
    %189 = vmatpush1.bf16.msra.mxu0 0
    %190 = vmatprep.subr.bf16.mxu0 0
    %191 = vmatpush1.bf16.msra.mxu0 0
    %192 = vmatprep.subr.bf16.mxu0 0
    %193 = vmatpush1.bf16.msra.mxu0 0
    %194 = vmatprep.subr.bf16.mxu0 0
    %195 = vmatpush1.bf16.msra.mxu0 0
    %196 = vmatprep.subr.bf16.mxu0 0
    %197 = vmatpush1.bf16.msra.mxu0 0
    %198 = vmatprep.mubr.bf16.mxu0 0
    %199 = vmatmul.mubr.bf16.gmra.mrb[0].mxu0 %v155
    %v200 = vpop.f32.mrb[0].mxu0
    %v201 = vadd.f32 %v76, %v200
    %v202 = vpop.f32.mrb[0].mxu0
    %v203 = vadd.f32 %v80, %v202
    %v204 = vpop.f32.mrb[0].mxu0
    %v205 = vadd.f32 %v76, %v204
    %v206 = vpop.f32.mrb[0].mxu0
    %v207 = vadd.f32 %v80, %v206
    %208 = vmatprep.mubr.bf16.mxu0 0
    %209 = vmatmul.mubr.bf16.gmra.mrb[0].mxu0 %v158
    %v210 = vpop.f32.mrb[0].mxu0
    %v211 = vadd.f32 %v76, %v210
    %v212 = vpop.f32.mrb[0].mxu0
    %v213 = vadd.f32 %v80, %v212
    %v214 = vpop.f32.mrb[0].mxu0
    %v215 = vadd.f32 %v76, %v214
    %v216 = vpop.f32.mrb[0].mxu0
    %v217 = vadd.f32 %v80, %v216
    %218 = vmatprep.mubr.bf16.mxu0 0
    %219 = vmatmul.mubr.bf16.gmra.mrb[0].mxu0 %v161
    %v220 = vpop.f32.mrb[0].mxu0
    %v221 = vadd.f32 %v76, %v220
    %v222 = vpop.f32.mrb[0].mxu0
    %v223 = vadd.f32 %v80, %v222
    %v224 = vpop.f32.mrb[0].mxu0
    %v225 = vadd.f32 %v76, %v224
    %v226 = vpop.f32.mrb[0].mxu0
    %v227 = vadd.f32 %v80, %v226
    %228 = vmatprep.mubr.bf16.mxu0 0
    %229 = vmatmul.mubr.bf16.gmra.mrb[0].mxu0 %v164
    %v230 = vpop.f32.mrb[0].mxu0
    %v231 = vadd.f32 %v76, %v230
    %v232 = vpop.f32.mrb[0].mxu0
    %v233 = vadd.f32 %v80, %v232
    %v234 = vpop.f32.mrb[0].mxu0
    %v235 = vadd.f32 %v76, %v234
    %v236 = vpop.f32.mrb[0].mxu0
    %v237 = vadd.f32 %v80, %v236
    %238 = vdwg.mxu0
    %239 = vmatprep.subr.bf16.mxu0 %v140
    %240 = vmatpush1.bf16.msra.mxu0 %v139
    %241 = vmatprep.subr.bf16.mxu0 %v144
    %242 = vmatpush1.bf16.msra.mxu0 %v143
    %243 = vmatprep.subr.bf16.mxu0 0
    %244 = vmatpush1.bf16.msra.mxu0 0
    %245 = vmatprep.subr.bf16.mxu0 0
    %246 = vmatpush1.bf16.msra.mxu0 0
    %247 = vmatprep.subr.bf16.mxu0 0
    %248 = vmatpush1.bf16.msra.mxu0 0
    %249 = vmatprep.subr.bf16.mxu0 0
    %250 = vmatpush1.bf16.msra.mxu0 0
    %251 = vmatprep.subr.bf16.mxu0 0
    %252 = vmatpush1.bf16.msra.mxu0 0
    %253 = vmatprep.subr.bf16.mxu0 0
    %254 = vmatpush1.bf16.msra.mxu0 0
    %255 = vmatprep.subr.bf16.mxu0 0
    %256 = vmatpush1.bf16.msra.mxu0 0
    %257 = vmatprep.subr.bf16.mxu0 0
    %258 = vmatpush1.bf16.msra.mxu0 0
    %259 = vmatprep.subr.bf16.mxu0 0
    %260 = vmatpush1.bf16.msra.mxu0 0
    %261 = vmatprep.subr.bf16.mxu0 0
    %262 = vmatpush1.bf16.msra.mxu0 0
    %263 = vmatprep.subr.bf16.mxu0 0
    %264 = vmatpush1.bf16.msra.mxu0 0
    %265 = vmatprep.subr.bf16.mxu0 0
    %266 = vmatpush1.bf16.msra.mxu0 0
    %267 = vmatprep.subr.bf16.mxu0 0
    %268 = vmatpush1.bf16.msra.mxu0 0
    %269 = vmatprep.subr.bf16.mxu0 0
    %270 = vmatpush1.bf16.msra.mxu0 0
    %271 = vmatprep.mubr.bf16.mxu0 0
    %272 = vmatmul.mubr.bf16.gmra.mrb[0].mxu0 %v155
    %v273 = vpop.f32.mrb[0].mxu0
    %v274 = vadd.f32 %v84, %v273
    %v275 = vpop.f32.mrb[0].mxu0
    %v276 = vadd.f32 %v88, %v275
    %v277 = vpop.f32.mrb[0].mxu0
    %v278 = vadd.f32 %v84, %v277
    %v279 = vpop.f32.mrb[0].mxu0
    %v280 = vadd.f32 %v88, %v279
    %281 = vmatprep.mubr.bf16.mxu0 0
    %282 = vmatmul.mubr.bf16.gmra.mrb[0].mxu0 %v158
    %v283 = vpop.f32.mrb[0].mxu0
    %v284 = vadd.f32 %v84, %v283
    %v285 = vpop.f32.mrb[0].mxu0
    %v286 = vadd.f32 %v88, %v285
    %v287 = vpop.f32.mrb[0].mxu0
    %v288 = vadd.f32 %v84, %v287
    %v289 = vpop.f32.mrb[0].mxu0
    %v290 = vadd.f32 %v88, %v289
    %291 = vmatprep.mubr.bf16.mxu0 0
    %292 = vmatmul.mubr.bf16.gmra.mrb[0].mxu0 %v161
    %v293 = vpop.f32.mrb[0].mxu0
    %v294 = vadd.f32 %v84, %v293
    %v295 = vpop.f32.mrb[0].mxu0
    %v296 = vadd.f32 %v88, %v295
    %v297 = vpop.f32.mrb[0].mxu0
    %v298 = vadd.f32 %v84, %v297
    %v299 = vpop.f32.mrb[0].mxu0
    %v300 = vadd.f32 %v88, %v299
    %301 = vmatprep.mubr.bf16.mxu0 0
    %302 = vmatmul.mubr.bf16.gmra.mrb[0].mxu0 %v164
    %v303 = vpop.f32.mrb[0].mxu0
    %v304 = vadd.f32 %v84, %v303
    %v305 = vpop.f32.mrb[0].mxu0
    %v306 = vadd.f32 %v88, %v305
    %v307 = vpop.f32.mrb[0].mxu0
    %v308 = vadd.f32 %v84, %v307
    %v309 = vpop.f32.mrb[0].mxu0
    %v310 = vadd.f32 %v88, %v309
    %311 = vdwg.mxu0
    %v312 = vpack.c.bf16 %v205, %v201
    %v313 = vpack.c.bf16 %v207, %v203
    %v314 = vpack.c.bf16 %v278, %v274
    %v315 = vpack.c.bf16 %v280, %v276
    %v316 = vpack.c.bf16 %v215, %v211
    %v317 = vpack.c.bf16 %v217, %v213
    %v318 = vpack.c.bf16 %v288, %v284
    %v319 = vpack.c.bf16 %v290, %v286
    %v320 = vpack.c.bf16 %v225, %v221
    %v321 = vpack.c.bf16 %v227, %v223
    %v322 = vpack.c.bf16 %v298, %v294
    %v323 = vpack.c.bf16 %v300, %v296
    %v324 = vpack.c.bf16 %v235, %v231
    %v325 = vpack.c.bf16 %v237, %v233
    %v326 = vpack.c.bf16 %v308, %v304
    %v327 = vpack.c.bf16 %v310, %v306
    %v344 = vunpack.c.l.b16 %v312
    %v345 = vunpack.c.l.b16 %v313
    %v346 = vunpack.c.l.b16 %v314
    %v347 = vunpack.c.l.b16 %v315
    %v348 = vunpack.c.h.b16 %v312
    %v349 = vunpack.c.h.b16 %v313
    %v350 = vunpack.c.h.b16 %v314
    %v351 = vunpack.c.h.b16 %v315
    %v352 = vunpack.c.l.b16 %v316
    %v353 = vunpack.c.l.b16 %v317
    %v354 = vunpack.c.l.b16 %v318
    %v355 = vunpack.c.l.b16 %v319
    %v356 = vunpack.c.h.b16 %v316
    %v357 = vunpack.c.h.b16 %v317
    %v358 = vunpack.c.h.b16 %v318
    %v359 = vunpack.c.h.b16 %v319
    %v360 = vunpack.c.l.b16 %v320
    %v361 = vunpack.c.l.b16 %v321
    %v362 = vunpack.c.l.b16 %v322
    %v363 = vunpack.c.l.b16 %v323
    %v364 = vunpack.c.h.b16 %v320
    %v365 = vunpack.c.h.b16 %v321
    %v366 = vunpack.c.h.b16 %v322
    %v367 = vunpack.c.h.b16 %v323
    %v368 = vunpack.c.l.b16 %v324
    %v369 = vunpack.c.l.b16 %v325
    %v370 = vunpack.c.l.b16 %v326
    %v371 = vunpack.c.l.b16 %v327
    %v372 = vunpack.c.h.b16 %v324
    %v373 = vunpack.c.h.b16 %v325
    %v374 = vunpack.c.h.b16 %v326
    %v375 = vunpack.c.h.b16 %v327
    %v376 = vpack.c.b16 %v345, %v344
    %v377 = vpack.c.b16 %v347, %v346
    %v378 = vpack.c.b16 %v349, %v348
    %v379 = vpack.c.b16 %v351, %v350
    %v380 = vpack.c.b16 %v353, %v352
    %v381 = vpack.c.b16 %v355, %v354
    %v382 = vpack.c.b16 %v357, %v356
    %v383 = vpack.c.b16 %v359, %v358
    %v384 = vpack.c.b16 %v361, %v360
    %v385 = vpack.c.b16 %v363, %v362
    %v386 = vpack.c.b16 %v365, %v364
    %v387 = vpack.c.b16 %v367, %v366
    %v388 = vpack.c.b16 %v369, %v368
    %v389 = vpack.c.b16 %v371, %v370
    %v390 = vpack.c.b16 %v373, %v372
    %v391 = vpack.c.b16 %v375, %v374
    %408 = vst [vmem:[#allocation8] sm:$0xff] %v376
    %409 = vst [vmem:[#allocation8 + $0x8] sm:$0xff] %v377
    %410 = vst [vmem:[#allocation8 + $0x10] sm:$0xff] %v378
    %411 = vst [vmem:[#allocation8 + $0x18] sm:$0xff] %v379
    %412 = vst [vmem:[#allocation8 + $0x20] sm:$0xff] %v380
    %413 = vst [vmem:[#allocation8 + $0x28] sm:$0xff] %v381
    %414 = vst [vmem:[#allocation8 + $0x30] sm:$0xff] %v382
    %415 = vst [vmem:[#allocation8 + $0x38] sm:$0xff] %v383
    %416 = vst [vmem:[#allocation8 + $0x40] sm:$0xff] %v384
    %417 = vst [vmem:[#allocation8 + $0x48] sm:$0xff] %v385
    %418 = vst [vmem:[#allocation8 + $0x50] sm:$0xff] %v386
    %419 = vst [vmem:[#allocation8 + $0x58] sm:$0xff] %v387
    %420 = vst [vmem:[#allocation8 + $0x60] sm:$0xff] %v388
    %421 = vst [vmem:[#allocation8 + $0x68] sm:$0xff] %v389
    %422 = vst [vmem:[#allocation8 + $0x70] sm:$0xff] %v390
    %423 = vst [vmem:[#allocation8 + $0x78] sm:$0xff] %v391
    // Predicated region
    $region26: #{tpu_custom_call.1} parent=1 // pred_check
      _
    $region27: #{tpu_custom_call.1} parent=1 // pred_check_branch
      %425 = sbr.rel (0) target = $region29
    $region28: #{tpu_custom_call.1} parent=1 // pred_region
      %s427 = ssub.s32 2048, 2048
      %428 = vsyncadd [#allocation4], %s427
      %s429 = sshll.u32 [#allocation8], 4
      %s430 = int_to_ptr.vmem [resolvable:$true] %s429
      %435 = dma.vmem_to_hbm [thread:$0]  %s430, 2048, %s3, [#allocation4], 256, 256, 16
    $region29: #{tpu_custom_call.1} parent=1 // pred_fallthru
      _
    // Predicated region
    $region30: #{tpu_custom_call.1} parent=1 // pred_check
      _
    $region31: #{tpu_custom_call.1} parent=1 // pred_check_branch
      %437 = sbr.rel (0) target = $region33
    $region32: #{tpu_custom_call.1} parent=1 // pred_region
      %438 = dma.done [#allocation4], 2048
    $region33: #{tpu_custom_call.1} parent=1 // pred_fallthru
      _
    %439 = vsyncpa [#allocation3], 1
    %440 = vsyncpa [#allocation6], 1
    %441 = vsyncpa [#allocation4], 1

</llo_original>
